<compile_context>
chip_gen: v7x
topology: tpu7x:2x2x1
jax: 0.10.0
libtpu: 0.0.40
codegen_flags: <defaults>
</compile_context>

<pallas_src>
import math

import jax
import jax.numpy as jnp
from jax.experimental import pallas as pl
from jax.experimental.pallas import tpu as pltpu

# ----------------------------- test-config (toy shapes) ----------------------
B = 2      # batch
S = 16     # sequence length
HID = 256  # hidden_size
INTER = 512  # intermediate_size

_INV_SQRT2 = 1.0 / math.sqrt(2.0)


# ----------------------------- kernel ----------------------------------------
def _intermediate_kernel(x_ref, w_ref, b_ref, o_ref):
    # x_ref: (tm, K) bf16, w_ref: (K, tn) bf16, b_ref: (1, tn) f32, o_ref: (tm, tn).
    # bf16 MXU operands, f32 accumulation; bias add + exact-erf GELU in f32 (erf/exp on EUP).
    y = jnp.dot(x_ref[...], w_ref[...], preferred_element_type=jnp.float32) + b_ref[...]
    o_ref[...] = (0.5 * y * (1.0 + jax.lax.erf(y * _INV_SQRT2))).astype(o_ref.dtype)


# ----------------------------- wrapper ----------------------------------------
def prepare_intermediate_params(wi, bi):
    """One-time parameter prep (hoisted out of the forward path).

    wi: [hidden_size, intermediate_size], bi: [intermediate_size].
    """
    return {
        "wi_bf16": jnp.asarray(wi, jnp.bfloat16),
        "bi_f32": jnp.asarray(bi, jnp.float32).reshape(1, -1),
    }


def _pick_tile(dim, preferred, granule):
    """Largest divisor of `dim` that is <= preferred and a multiple of `granule`
    (falls back to the full dim, which is always legal for a BlockSpec)."""
    if dim <= preferred:
        return dim
    t = (preferred // granule) * granule
    while t >= granule:
        if dim % t == 0:
            return t
        t -= granule
    return dim


def bert_intermediate(hidden_states, prepped, *, tm=256, tn=512,
                      out_dtype=jnp.float32):
    """BertIntermediate.forward: GELU(hidden_states @ Wi + bi).

    hidden_states: [..., hidden_size]; returns [..., intermediate_size].
    """
    orig_shape = hidden_states.shape
    k = orig_shape[-1]
    # Cast activations to bf16 once in the wrapper (halves activation DMA; the
    # MXU consumes bf16 directly). GELU / bias math stays f32 inside the kernel.
    x2d = hidden_states.reshape(-1, k).astype(jnp.bfloat16)
    m = x2d.shape[0]
    n = prepped["wi_bf16"].shape[1]

    # M-parallel / N-parallel grid, full-K blocks. Sublane granule 8 for rows,
    # lane granule 128 for the output (lane-dense stores, unmasked vst).
    tm = _pick_tile(m, tm, 8)
    tn = _pick_tile(n, tn, 128)
    grid = (m // tm, n // tn)

    out_bytes = jnp.dtype(out_dtype).itemsize
    out = pl.pallas_call(
        _intermediate_kernel,
        out_shape=jax.ShapeDtypeStruct((m, n), out_dtype),
        grid=grid,
        in_specs=[
            pl.BlockSpec((tm, k), lambda i, j: (i, 0)),   # activations: row tiles
            pl.BlockSpec((k, tn), lambda i, j: (0, j)),   # weights: column tiles
            pl.BlockSpec((1, tn), lambda i, j: (0, j)),   # bias row
        ],
        out_specs=pl.BlockSpec((tm, tn), lambda i, j: (i, j)),
        compiler_params=pltpu.CompilerParams(
            dimension_semantics=("parallel", "parallel")),
        cost_estimate=pl.CostEstimate(
            flops=2 * m * k * n,
            transcendentals=m * n,
            bytes_accessed=m * k * 2 + k * n * 2 + n * 4 + m * n * out_bytes),
    )(x2d, prepped["wi_bf16"], prepped["bi_f32"])
    return out.reshape(orig_shape[:-1] + (n,))


# ----------------------------- pure-JAX f32 reference -------------------------
def reference_intermediate(hidden_states, wi, bi):
    y = hidden_states.reshape(-1, hidden_states.shape[-1]) @ wi + bi
    y = 0.5 * y * (1.0 + jax.lax.erf(y * _INV_SQRT2))
    return y.reshape(hidden_states.shape[:-1] + (wi.shape[1],))


# ----------------------------- main -------------------------------------------
if __name__ == "__main__":
    key = jax.random.PRNGKey(0)
    kx, kw, kb = jax.random.split(key, 3)

    hidden_states = jax.random.normal(kx, (B, S, HID), dtype=jnp.float32)
    wi = (0.02 * jax.random.normal(kw, (HID, INTER))).astype(jnp.float32)
    bi = (0.02 * jax.random.normal(kb, (INTER,))).astype(jnp.float32)

    prepped = prepare_intermediate_params(wi, bi)          # one-time weight prep
    out = jax.block_until_ready(bert_intermediate(hidden_states, prepped))

    ref = jax.block_until_ready(reference_intermediate(hidden_states, wi, bi))
    assert out.shape == (B, S, INTER)
    # Tolerance loosened vs the f32 reference because MXU operands are bf16.
    max_err = jnp.max(jnp.abs(out.astype(jnp.float32) - ref))
    assert max_err < 2e-2, f"BertIntermediate mismatch vs reference: {max_err}"

    print("KERNEL_OK")
</pallas_src>

<mosaic_0001>
module attributes {stable_mosaic.version = 11 : i64} {
  func.func @_intermediate_kernel(%arg0: i32, %arg1: i32, %arg2: memref<32x256xbf16, #tpu.memory_space<vmem>>, %arg3: memref<256x512xbf16, #tpu.memory_space<vmem>>, %arg4: memref<1x512xf32, #tpu.memory_space<vmem>>, %arg5: memref<32x512xf32, #tpu.memory_space<vmem>>) attributes {dimension_semantics = [#tpu.dimension_semantics<parallel>, #tpu.dimension_semantics<parallel>], iteration_bounds = array<i64: 1, 1>, scalar_prefetch = 0 : i64, scratch_operands = 0 : i64, tpu.core_type = #tpu.core_type<tc>, window_params = [{transform_indices = @transform_0, window_bounds = array<i64: 32, 256>}, {transform_indices = @transform_1, window_bounds = array<i64: 256, 512>}, {transform_indices = @transform_2, window_bounds = array<i64: 1, 512>}, {transform_indices = @transform_3, window_bounds = array<i64: 32, 512>}]} {
    %c0 = arith.constant 0 : index
    %c0_0 = arith.constant 0 : index
    %0 = vector.load %arg2[%c0, %c0_0] : memref<32x256xbf16, #tpu.memory_space<vmem>>, vector<32x256xbf16>
    %c0_1 = arith.constant 0 : index
    %c0_2 = arith.constant 0 : index
    %1 = vector.load %arg3[%c0_1, %c0_2] : memref<256x512xbf16, #tpu.memory_space<vmem>>, vector<256x512xbf16>
    %cst = arith.constant dense<0.000000e+00> : vector<32x512xf32>
    %2 = tpu.matmul %0, %1, %cst {dimension_numbers = #tpu.dot_dimension_numbers<[1], [0], [0], [1], [0, 0, 1, 1], [], []>} : vector<32x256xbf16>, vector<256x512xbf16>, vector<32x512xf32> -> vector<32x512xf32>
    %c0_3 = arith.constant 0 : index
    %c0_4 = arith.constant 0 : index
    %3 = vector.load %arg4[%c0_3, %c0_4] : memref<1x512xf32, #tpu.memory_space<vmem>>, vector<1x512xf32>
    %4 = vector.broadcast %3 : vector<1x512xf32> to vector<32x512xf32>
    %5 = arith.addf %2, %4 : vector<32x512xf32>
    %cst_5 = arith.constant 5.000000e-01 : f32
    %6 = vector.broadcast %cst_5 : f32 to vector<32x512xf32>
    %7 = arith.mulf %6, %5 : vector<32x512xf32>
    %cst_6 = arith.constant 0.707106769 : f32
    %8 = vector.broadcast %cst_6 : f32 to vector<32x512xf32>
    %9 = arith.mulf %5, %8 : vector<32x512xf32>
    %10 = math.erf %9 : vector<32x512xf32>
    %cst_7 = arith.constant 1.000000e+00 : f32
    %11 = vector.broadcast %cst_7 : f32 to vector<32x512xf32>
    %12 = arith.addf %11, %10 : vector<32x512xf32>
    %13 = arith.mulf %7, %12 : vector<32x512xf32>
    %c0_8 = arith.constant 0 : index
    %c0_9 = arith.constant 0 : index
    %14 = vector.load %arg5[%c0_8, %c0_9] : memref<32x512xf32, #tpu.memory_space<vmem>>, vector<32x512xf32>
    tpu.vector_store %arg5[%c0_8, %c0_9], %13 {strides = array<i32>} : memref<32x512xf32, #tpu.memory_space<vmem>>, vector<32x512xf32>,
    return
  }
  func.func @transform_0(%arg0: i32, %arg1: i32) -> (i32, i32) {
    %c0_i32 = arith.constant 0 : i32
    %c0_i32_0 = arith.constant 0 : i32
    return %arg0, %c0_i32 : i32, i32
  }
  func.func @transform_1(%arg0: i32, %arg1: i32) -> (i32, i32) {
    %c0_i32 = arith.constant 0 : i32
    %c0_i32_0 = arith.constant 0 : i32
    return %c0_i32, %arg1 : i32, i32
  }
  func.func @transform_2(%arg0: i32, %arg1: i32) -> (i32, i32) {
    %c0_i32 = arith.constant 0 : i32
    %c0_i32_0 = arith.constant 0 : i32
    return %c0_i32, %arg1 : i32, i32
  }
  func.func @transform_3(%arg0: i32, %arg1: i32) -> (i32, i32) {
    %c0_i32 = arith.constant 0 : i32
    return %arg0, %arg1 : i32, i32
  }
}

</mosaic_0001>

<llo_original>
// kernel: tpu_custom_call.1
$region0: #{tpu_custom_call.1}
  #allocation0 [shape = 'u32[]', space=smem, size = 0x4, offset = 0x4, fixed_abs, tag = 'smem constant byte address 0x4 - core index']
  #allocation1 [shape = 'u32[144,128]{1,0:T(1,128)}', space=vmem, size = 0x12000, scoped, tag = 'internal scratch']
  %s0 = inlined_call_operand.hbm [shape: bf16[32,256], index: 0, kind: input, shape index: {}]
  %s1 = inlined_call_operand.hbm [shape: bf16[256,512], index: 1, kind: input, shape index: {}]
  %s2 = inlined_call_operand.vmem [shape: f32[1,512], index: 2, kind: input, shape index: {}]
  %s3 = inlined_call_operand.hbm [shape: f32[32,512], index: 3, kind: output, shape index: {}]
  %s4 = sld [smem:[#allocation0]]
  $region30: #{tpu_custom_call.1} parent=0
    _
  %s6 = ssub.s32 1, %s4
  %s7 = scalar_select 0, %s6, %s4
  $region1: #{tpu_custom_call.1} parent=0
    #allocation2 [shape = 'u8[16384]{0}', space=vmem, size = 0x4000, scoped, tag = 'input window, operand 0, single buffered']
    #allocation3 [shape = 's32[1]{0}', space=sflag, size = 0x4, scoped, tag = 'scoped memory for tpu_custom_call.1']
    #allocation4 [shape = 's32[1]{0}', space=sflag, size = 0x4, scoped, tag = 'scoped memory for tpu_custom_call.1']
    #allocation5 [shape = 'u8[262144]{0}', space=vmem, size = 0x40000, scoped, tag = 'input window, operand 1, single buffered']
    #allocation6 [shape = 's32[1]{0}', space=sflag, size = 0x4, scoped, tag = 'scoped memory for tpu_custom_call.1']
    #allocation7 [shape = 'u8[65536]{0}', space=vmem, size = 0x10000, scoped, tag = 'output window, operand 0, single buffered']
    %8 = vsyncpa [#allocation3], 0
    %9 = vsyncpa [#allocation6], 0
    %10 = vsyncpa [#allocation4], 0
    // Predicated region
    $region2: #{tpu_custom_call.1} parent=1 // pred_check
      _
    $region3: #{tpu_custom_call.1} parent=1 // pred_check_branch
      %12 = sbr.rel (0) target = $region5
    $region4: #{tpu_custom_call.1} parent=1 // pred_region
      %s14 = ssub.s32 512, 512
      %15 = vsyncadd [#allocation3], %s14
      %s16 = sshll.u32 [#allocation2], 4
      %s17 = int_to_ptr.vmem [resolvable:$true] %s16
      %22 = dma.hbm_to_vmem [thread:$0]  %s0, 512, %s17, [#allocation3], 128, 128, 8
    $region5: #{tpu_custom_call.1} parent=1 // pred_fallthru
      _
    // Predicated region
    $region6: #{tpu_custom_call.1} parent=1 // pred_check
      _
    $region7: #{tpu_custom_call.1} parent=1 // pred_check_branch
      %24 = sbr.rel (0) target = $region9
    $region8: #{tpu_custom_call.1} parent=1 // pred_region
      %s26 = ssub.s32 8192, 8192
      %27 = vsyncadd [#allocation6], %s26
      %s28 = sshll.u32 [#allocation5], 4
      %s29 = int_to_ptr.vmem [resolvable:$true] %s28
      %34 = dma.hbm_to_vmem [thread:$0]  %s1, 8192, %s29, [#allocation6], 256, 256, 16
    $region9: #{tpu_custom_call.1} parent=1 // pred_fallthru
      _
    // Predicated region
    $region10: #{tpu_custom_call.1} parent=1 // pred_check
      _
    $region11: #{tpu_custom_call.1} parent=1 // pred_check_branch
      %36 = sbr.rel (0) target = $region13
    $region12: #{tpu_custom_call.1} parent=1 // pred_region
      _
    $region13: #{tpu_custom_call.1} parent=1 // pred_fallthru
      _
    // Predicated region
    $region14: #{tpu_custom_call.1} parent=1 // pred_check
      _
    $region15: #{tpu_custom_call.1} parent=1 // pred_check_branch
      %38 = sbr.rel (0) target = $region17
    $region16: #{tpu_custom_call.1} parent=1 // pred_region
      %39 = dma.done [#allocation3], 512
    $region17: #{tpu_custom_call.1} parent=1 // pred_fallthru
      _
    // Predicated region
    $region18: #{tpu_custom_call.1} parent=1 // pred_check
      _
    $region19: #{tpu_custom_call.1} parent=1 // pred_check_branch
      %41 = sbr.rel (0) target = $region21
    $region20: #{tpu_custom_call.1} parent=1 // pred_region
      %42 = dma.done [#allocation6], 8192
    $region21: #{tpu_custom_call.1} parent=1 // pred_fallthru
      _
    %v43 = vld [vmem:[#allocation2] sm:$0xff]
    %v44 = vld [vmem:[#allocation2 + $0x8] sm:$0xff]
    %v45 = vld [vmem:[#allocation2 + $0x10] sm:$0xff]
    %v46 = vld [vmem:[#allocation2 + $0x18] sm:$0xff]
    %v47 = vld [vmem:[#allocation5] sm:$0xff]
    %v48 = vld [vmem:[#allocation5 + $0x8] sm:$0xff]
    %v49 = vld [vmem:[#allocation5 + $0x10] sm:$0xff]
    %v50 = vld [vmem:[#allocation5 + $0x18] sm:$0xff]
    %v51 = vld [vmem:[#allocation5 + $0x20] sm:$0xff]
    %v52 = vld [vmem:[#allocation5 + $0x28] sm:$0xff]
    %v53 = vld [vmem:[#allocation5 + $0x30] sm:$0xff]
    %v54 = vld [vmem:[#allocation5 + $0x38] sm:$0xff]
    %v55 = vld [vmem:[#allocation5 + $0x40] sm:$0xff]
    %v56 = vld [vmem:[#allocation5 + $0x48] sm:$0xff]
    %v57 = vld [vmem:[#allocation5 + $0x50] sm:$0xff]
    %v58 = vld [vmem:[#allocation5 + $0x58] sm:$0xff]
    %v59 = vld [vmem:[#allocation5 + $0x60] sm:$0xff]
    %v60 = vld [vmem:[#allocation5 + $0x68] sm:$0xff]
    %v61 = vld [vmem:[#allocation5 + $0x70] sm:$0xff]
    %v62 = vld [vmem:[#allocation5 + $0x78] sm:$0xff]
    %v63 = vld [vmem:[#allocation5 + $0x80] sm:$0xff]
    %v64 = vld [vmem:[#allocation5 + $0x88] sm:$0xff]
    %v65 = vld [vmem:[#allocation5 + $0x90] sm:$0xff]
    %v66 = vld [vmem:[#allocation5 + $0x98] sm:$0xff]
    %v67 = vld [vmem:[#allocation5 + $0xa0] sm:$0xff]
    %v68 = vld [vmem:[#allocation5 + $0xa8] sm:$0xff]
    %v69 = vld [vmem:[#allocation5 + $0xb0] sm:$0xff]
    %v70 = vld [vmem:[#allocation5 + $0xb8] sm:$0xff]
    %v71 = vld [vmem:[#allocation5 + $0xc0] sm:$0xff]
    %v72 = vld [vmem:[#allocation5 + $0xc8] sm:$0xff]
    %v73 = vld [vmem:[#allocation5 + $0xd0] sm:$0xff]
    %v74 = vld [vmem:[#allocation5 + $0xd8] sm:$0xff]
    %v75 = vld [vmem:[#allocation5 + $0xe0] sm:$0xff]
    %v76 = vld [vmem:[#allocation5 + $0xe8] sm:$0xff]
    %v77 = vld [vmem:[#allocation5 + $0xf0] sm:$0xff]
    %v78 = vld [vmem:[#allocation5 + $0xf8] sm:$0xff]
    %v79 = vld [vmem:[#allocation5 + $0x100] sm:$0xff]
    %v80 = vld [vmem:[#allocation5 + $0x108] sm:$0xff]
    %v81 = vld [vmem:[#allocation5 + $0x110] sm:$0xff]
    %v82 = vld [vmem:[#allocation5 + $0x118] sm:$0xff]
    %v83 = vld [vmem:[#allocation5 + $0x120] sm:$0xff]
    %v84 = vld [vmem:[#allocation5 + $0x128] sm:$0xff]
    %v85 = vld [vmem:[#allocation5 + $0x130] sm:$0xff]
    %v86 = vld [vmem:[#allocation5 + $0x138] sm:$0xff]
    %v87 = vld [vmem:[#allocation5 + $0x140] sm:$0xff]
    %v88 = vld [vmem:[#allocation5 + $0x148] sm:$0xff]
    %v89 = vld [vmem:[#allocation5 + $0x150] sm:$0xff]
    %v90 = vld [vmem:[#allocation5 + $0x158] sm:$0xff]
    %v91 = vld [vmem:[#allocation5 + $0x160] sm:$0xff]
    %v92 = vld [vmem:[#allocation5 + $0x168] sm:$0xff]
    %v93 = vld [vmem:[#allocation5 + $0x170] sm:$0xff]
    %v94 = vld [vmem:[#allocation5 + $0x178] sm:$0xff]
    %v95 = vld [vmem:[#allocation5 + $0x180] sm:$0xff]
    %v96 = vld [vmem:[#allocation5 + $0x188] sm:$0xff]
    %v97 = vld [vmem:[#allocation5 + $0x190] sm:$0xff]
    %v98 = vld [vmem:[#allocation5 + $0x198] sm:$0xff]
    %v99 = vld [vmem:[#allocation5 + $0x1a0] sm:$0xff]
    %v100 = vld [vmem:[#allocation5 + $0x1a8] sm:$0xff]
    %v101 = vld [vmem:[#allocation5 + $0x1b0] sm:$0xff]
    %v102 = vld [vmem:[#allocation5 + $0x1b8] sm:$0xff]
    %v103 = vld [vmem:[#allocation5 + $0x1c0] sm:$0xff]
    %v104 = vld [vmem:[#allocation5 + $0x1c8] sm:$0xff]
    %v105 = vld [vmem:[#allocation5 + $0x1d0] sm:$0xff]
    %v106 = vld [vmem:[#allocation5 + $0x1d8] sm:$0xff]
    %v107 = vld [vmem:[#allocation5 + $0x1e0] sm:$0xff]
    %v108 = vld [vmem:[#allocation5 + $0x1e8] sm:$0xff]
    %v109 = vld [vmem:[#allocation5 + $0x1f0] sm:$0xff]
    %v110 = vld [vmem:[#allocation5 + $0x1f8] sm:$0xff]
    %v111 = vld [vmem:[%s2] sm:$0xf]
    %v113 = vlaneseq
    %v114 = vshrl.u32 %v113, 7
    %v115 = vsub.s32 0, %v114
    %v116 = vrot.slane %v111, %v115
    %v117 = vlaneseq
    %v118 = vshrl.u32 %v117, 7
    %v119 = vsub.s32 1, %v118
    %v120 = vrot.slane %v111, %v119
    %v121 = vlaneseq
    %v122 = vshrl.u32 %v121, 7
    %v123 = vsub.s32 2, %v122
    %v124 = vrot.slane %v111, %v123
    %v125 = vlaneseq
    %v126 = vshrl.u32 %v125, 7
    %v127 = vsub.s32 3, %v126
    %v128 = vrot.slane %v111, %v127
    %v137 = vunpack.c.l.b16 %v43
    %v138 = vunpack.c.h.b16 %v43
    %v139 = vunpack.c.l.b16 %v44
    %v140 = vunpack.c.h.b16 %v44
    %v141 = vunpack.c.l.b16 %v45
    %v142 = vunpack.c.h.b16 %v45
    %v143 = vunpack.c.l.b16 %v46
    %v144 = vunpack.c.h.b16 %v46
    %v145 = vpack.c.b16 %v139, %v137
    %v146 = vpack.c.b16 %v140, %v138
    %v147 = vpack.c.b16 %v143, %v141
    %v148 = vpack.c.b16 %v144, %v142
    %v217 = vunpack.c.l.b16 %v47
    %v218 = vunpack.c.h.b16 %v47
    %v219 = vunpack.c.l.b16 %v48
    %v220 = vunpack.c.h.b16 %v48
    %v221 = vunpack.c.l.b16 %v49
    %v222 = vunpack.c.h.b16 %v49
    %v223 = vunpack.c.l.b16 %v50
    %v224 = vunpack.c.h.b16 %v50
    %v225 = vunpack.c.l.b16 %v51
    %v226 = vunpack.c.h.b16 %v51
    %v227 = vunpack.c.l.b16 %v52
    %v228 = vunpack.c.h.b16 %v52
    %v229 = vunpack.c.l.b16 %v53
    %v230 = vunpack.c.h.b16 %v53
    %v231 = vunpack.c.l.b16 %v54
    %v232 = vunpack.c.h.b16 %v54
    %v233 = vunpack.c.l.b16 %v55
    %v234 = vunpack.c.h.b16 %v55
    %v235 = vunpack.c.l.b16 %v56
    %v236 = vunpack.c.h.b16 %v56
    %v237 = vunpack.c.l.b16 %v57
    %v238 = vunpack.c.h.b16 %v57
    %v239 = vunpack.c.l.b16 %v58
    %v240 = vunpack.c.h.b16 %v58
    %v241 = vunpack.c.l.b16 %v59
    %v242 = vunpack.c.h.b16 %v59
    %v243 = vunpack.c.l.b16 %v60
    %v244 = vunpack.c.h.b16 %v60
    %v245 = vunpack.c.l.b16 %v61
    %v246 = vunpack.c.h.b16 %v61
    %v247 = vunpack.c.l.b16 %v62
    %v248 = vunpack.c.h.b16 %v62
    %v249 = vunpack.c.l.b16 %v63
    %v250 = vunpack.c.h.b16 %v63
    %v251 = vunpack.c.l.b16 %v64
    %v252 = vunpack.c.h.b16 %v64
    %v253 = vunpack.c.l.b16 %v65
    %v254 = vunpack.c.h.b16 %v65
    %v255 = vunpack.c.l.b16 %v66
    %v256 = vunpack.c.h.b16 %v66
    %v257 = vunpack.c.l.b16 %v67
    %v258 = vunpack.c.h.b16 %v67
    %v259 = vunpack.c.l.b16 %v68
    %v260 = vunpack.c.h.b16 %v68
    %v261 = vunpack.c.l.b16 %v69
    %v262 = vunpack.c.h.b16 %v69
    %v263 = vunpack.c.l.b16 %v70
    %v264 = vunpack.c.h.b16 %v70
    %v265 = vunpack.c.l.b16 %v71
    %v266 = vunpack.c.h.b16 %v71
    %v267 = vunpack.c.l.b16 %v72
    %v268 = vunpack.c.h.b16 %v72
    %v269 = vunpack.c.l.b16 %v73
    %v270 = vunpack.c.h.b16 %v73
    %v271 = vunpack.c.l.b16 %v74
    %v272 = vunpack.c.h.b16 %v74
    %v273 = vunpack.c.l.b16 %v75
    %v274 = vunpack.c.h.b16 %v75
    %v275 = vunpack.c.l.b16 %v76
    %v276 = vunpack.c.h.b16 %v76
    %v277 = vunpack.c.l.b16 %v77
    %v278 = vunpack.c.h.b16 %v77
    %v279 = vunpack.c.l.b16 %v78
    %v280 = vunpack.c.h.b16 %v78
    %v281 = vunpack.c.l.b16 %v79
    %v282 = vunpack.c.h.b16 %v79
    %v283 = vunpack.c.l.b16 %v80
    %v284 = vunpack.c.h.b16 %v80
    %v285 = vunpack.c.l.b16 %v81
    %v286 = vunpack.c.h.b16 %v81
    %v287 = vunpack.c.l.b16 %v82
    %v288 = vunpack.c.h.b16 %v82
    %v289 = vunpack.c.l.b16 %v83
    %v290 = vunpack.c.h.b16 %v83
    %v291 = vunpack.c.l.b16 %v84
    %v292 = vunpack.c.h.b16 %v84
    %v293 = vunpack.c.l.b16 %v85
    %v294 = vunpack.c.h.b16 %v85
    %v295 = vunpack.c.l.b16 %v86
    %v296 = vunpack.c.h.b16 %v86
    %v297 = vunpack.c.l.b16 %v87
    %v298 = vunpack.c.h.b16 %v87
    %v299 = vunpack.c.l.b16 %v88
    %v300 = vunpack.c.h.b16 %v88
    %v301 = vunpack.c.l.b16 %v89
    %v302 = vunpack.c.h.b16 %v89
    %v303 = vunpack.c.l.b16 %v90
    %v304 = vunpack.c.h.b16 %v90
    %v305 = vunpack.c.l.b16 %v91
    %v306 = vunpack.c.h.b16 %v91
    %v307 = vunpack.c.l.b16 %v92
    %v308 = vunpack.c.h.b16 %v92
    %v309 = vunpack.c.l.b16 %v93
    %v310 = vunpack.c.h.b16 %v93
    %v311 = vunpack.c.l.b16 %v94
    %v312 = vunpack.c.h.b16 %v94
    %v313 = vunpack.c.l.b16 %v95
    %v314 = vunpack.c.h.b16 %v95
    %v315 = vunpack.c.l.b16 %v96
    %v316 = vunpack.c.h.b16 %v96
    %v317 = vunpack.c.l.b16 %v97
    %v318 = vunpack.c.h.b16 %v97
    %v319 = vunpack.c.l.b16 %v98
    %v320 = vunpack.c.h.b16 %v98
    %v321 = vunpack.c.l.b16 %v99
    %v322 = vunpack.c.h.b16 %v99
    %v323 = vunpack.c.l.b16 %v100
    %v324 = vunpack.c.h.b16 %v100
    %v325 = vunpack.c.l.b16 %v101
    %v326 = vunpack.c.h.b16 %v101
    %v327 = vunpack.c.l.b16 %v102
    %v328 = vunpack.c.h.b16 %v102
    %v329 = vunpack.c.l.b16 %v103
    %v330 = vunpack.c.h.b16 %v103
    %v331 = vunpack.c.l.b16 %v104
    %v332 = vunpack.c.h.b16 %v104
    %v333 = vunpack.c.l.b16 %v105
    %v334 = vunpack.c.h.b16 %v105
    %v335 = vunpack.c.l.b16 %v106
    %v336 = vunpack.c.h.b16 %v106
    %v337 = vunpack.c.l.b16 %v107
    %v338 = vunpack.c.h.b16 %v107
    %v339 = vunpack.c.l.b16 %v108
    %v340 = vunpack.c.h.b16 %v108
    %v341 = vunpack.c.l.b16 %v109
    %v342 = vunpack.c.h.b16 %v109
    %v343 = vunpack.c.l.b16 %v110
    %v344 = vunpack.c.h.b16 %v110
    %v345 = vpack.c.b16 %v221, %v217
    %v346 = vpack.c.b16 %v222, %v218
    %v347 = vpack.c.b16 %v223, %v219
    %v348 = vpack.c.b16 %v224, %v220
    %v349 = vpack.c.b16 %v229, %v225
    %v350 = vpack.c.b16 %v230, %v226
    %v351 = vpack.c.b16 %v231, %v227
    %v352 = vpack.c.b16 %v232, %v228
    %v353 = vpack.c.b16 %v237, %v233
    %v354 = vpack.c.b16 %v238, %v234
    %v355 = vpack.c.b16 %v239, %v235
    %v356 = vpack.c.b16 %v240, %v236
    %v357 = vpack.c.b16 %v245, %v241
    %v358 = vpack.c.b16 %v246, %v242
    %v359 = vpack.c.b16 %v247, %v243
    %v360 = vpack.c.b16 %v248, %v244
    %v361 = vpack.c.b16 %v253, %v249
    %v362 = vpack.c.b16 %v254, %v250
    %v363 = vpack.c.b16 %v255, %v251
    %v364 = vpack.c.b16 %v256, %v252
    %v365 = vpack.c.b16 %v261, %v257
    %v366 = vpack.c.b16 %v262, %v258
    %v367 = vpack.c.b16 %v263, %v259
    %v368 = vpack.c.b16 %v264, %v260
    %v369 = vpack.c.b16 %v269, %v265
    %v370 = vpack.c.b16 %v270, %v266
    %v371 = vpack.c.b16 %v271, %v267
    %v372 = vpack.c.b16 %v272, %v268
    %v373 = vpack.c.b16 %v277, %v273
    %v374 = vpack.c.b16 %v278, %v274
    %v375 = vpack.c.b16 %v279, %v275
    %v376 = vpack.c.b16 %v280, %v276
    %v377 = vpack.c.b16 %v285, %v281
    %v378 = vpack.c.b16 %v286, %v282
    %v379 = vpack.c.b16 %v287, %v283
    %v380 = vpack.c.b16 %v288, %v284
    %v381 = vpack.c.b16 %v293, %v289
    %v382 = vpack.c.b16 %v294, %v290
    %v383 = vpack.c.b16 %v295, %v291
    %v384 = vpack.c.b16 %v296, %v292
    %v385 = vpack.c.b16 %v301, %v297
    %v386 = vpack.c.b16 %v302, %v298
    %v387 = vpack.c.b16 %v303, %v299
    %v388 = vpack.c.b16 %v304, %v300
    %v389 = vpack.c.b16 %v309, %v305
    %v390 = vpack.c.b16 %v310, %v306
    %v391 = vpack.c.b16 %v311, %v307
    %v392 = vpack.c.b16 %v312, %v308
    %v393 = vpack.c.b16 %v317, %v313
    %v394 = vpack.c.b16 %v318, %v314
    %v395 = vpack.c.b16 %v319, %v315
    %v396 = vpack.c.b16 %v320, %v316
    %v397 = vpack.c.b16 %v325, %v321
    %v398 = vpack.c.b16 %v326, %v322
    %v399 = vpack.c.b16 %v327, %v323
    %v400 = vpack.c.b16 %v328, %v324
    %v401 = vpack.c.b16 %v333, %v329
    %v402 = vpack.c.b16 %v334, %v330
    %v403 = vpack.c.b16 %v335, %v331
    %v404 = vpack.c.b16 %v336, %v332
    %v405 = vpack.c.b16 %v341, %v337
    %v406 = vpack.c.b16 %v342, %v338
    %v407 = vpack.c.b16 %v343, %v339
    %v408 = vpack.c.b16 %v344, %v340
    %473 = vmatprep.subr.bf16.mxu0 %v346
    %474 = vmatpush1.bf16.msra.mxu0 %v345
    %475 = vmatprep.subr.bf16.mxu0 %v350
    %476 = vmatpush1.bf16.msra.mxu0 %v349
    %477 = vmatprep.subr.bf16.mxu0 %v354
    %478 = vmatpush1.bf16.msra.mxu0 %v353
    %479 = vmatprep.subr.bf16.mxu0 %v358
    %480 = vmatpush1.bf16.msra.mxu0 %v357
    %481 = vmatprep.subr.bf16.mxu0 %v362
    %482 = vmatpush1.bf16.msra.mxu0 %v361
    %483 = vmatprep.subr.bf16.mxu0 %v366
    %484 = vmatpush1.bf16.msra.mxu0 %v365
    %485 = vmatprep.subr.bf16.mxu0 %v370
    %486 = vmatpush1.bf16.msra.mxu0 %v369
    %487 = vmatprep.subr.bf16.mxu0 %v374
    %488 = vmatpush1.bf16.msra.mxu0 %v373
    %489 = vmatprep.subr.bf16.mxu0 %v378
    %490 = vmatpush1.bf16.msra.mxu0 %v377
    %491 = vmatprep.subr.bf16.mxu0 %v382
    %492 = vmatpush1.bf16.msra.mxu0 %v381
    %493 = vmatprep.subr.bf16.mxu0 %v386
    %494 = vmatpush1.bf16.msra.mxu0 %v385
    %495 = vmatprep.subr.bf16.mxu0 %v390
    %496 = vmatpush1.bf16.msra.mxu0 %v389
    %497 = vmatprep.subr.bf16.mxu0 %v394
    %498 = vmatpush1.bf16.msra.mxu0 %v393
    %499 = vmatprep.subr.bf16.mxu0 %v398
    %500 = vmatpush1.bf16.msra.mxu0 %v397
    %501 = vmatprep.subr.bf16.mxu0 %v402
    %502 = vmatpush1.bf16.msra.mxu0 %v401
    %503 = vmatprep.subr.bf16.mxu0 %v406
    %504 = vmatpush1.bf16.msra.mxu0 %v405
    %505 = vmatprep.mubr.bf16.mxu0 %v146
    %506 = vmatmul.mubr.bf16.gmra.mrb[0].mxu0 %v145
    %v507 = vpop.f32.mrb[0].mxu0
    %v508 = vadd.f32 %v116, %v507
    %v509 = vpop.f32.mrb[0].mxu0
    %v510 = vadd.f32 %v120, %v509
    %v511 = vpop.f32.mrb[0].mxu0
    %v512 = vadd.f32 %v116, %v511
    %v513 = vpop.f32.mrb[0].mxu0
    %v514 = vadd.f32 %v120, %v513
    %515 = vmatprep.mubr.bf16.mxu0 %v148
    %516 = vmatmul.mubr.bf16.gmra.mrb[0].mxu0 %v147
    %v517 = vpop.f32.mrb[0].mxu0
    %v518 = vadd.f32 %v116, %v517
    %v519 = vpop.f32.mrb[0].mxu0
    %v520 = vadd.f32 %v120, %v519
    %v521 = vpop.f32.mrb[0].mxu0
    %v522 = vadd.f32 %v116, %v521
    %v523 = vpop.f32.mrb[0].mxu0
    %v524 = vadd.f32 %v120, %v523
    %525 = vdwg.mxu0
    %526 = vmatprep.subr.bf16.mxu0 %v348
    %527 = vmatpush1.bf16.msra.mxu0 %v347
    %528 = vmatprep.subr.bf16.mxu0 %v352
    %529 = vmatpush1.bf16.msra.mxu0 %v351
    %530 = vmatprep.subr.bf16.mxu0 %v356
    %531 = vmatpush1.bf16.msra.mxu0 %v355
    %532 = vmatprep.subr.bf16.mxu0 %v360
    %533 = vmatpush1.bf16.msra.mxu0 %v359
    %534 = vmatprep.subr.bf16.mxu0 %v364
    %535 = vmatpush1.bf16.msra.mxu0 %v363
    %536 = vmatprep.subr.bf16.mxu0 %v368
    %537 = vmatpush1.bf16.msra.mxu0 %v367
    %538 = vmatprep.subr.bf16.mxu0 %v372
    %539 = vmatpush1.bf16.msra.mxu0 %v371
    %540 = vmatprep.subr.bf16.mxu0 %v376
    %541 = vmatpush1.bf16.msra.mxu0 %v375
    %542 = vmatprep.subr.bf16.mxu0 %v380
    %543 = vmatpush1.bf16.msra.mxu0 %v379
    %544 = vmatprep.subr.bf16.mxu0 %v384
    %545 = vmatpush1.bf16.msra.mxu0 %v383
    %546 = vmatprep.subr.bf16.mxu0 %v388
    %547 = vmatpush1.bf16.msra.mxu0 %v387
    %548 = vmatprep.subr.bf16.mxu0 %v392
    %549 = vmatpush1.bf16.msra.mxu0 %v391
    %550 = vmatprep.subr.bf16.mxu0 %v396
    %551 = vmatpush1.bf16.msra.mxu0 %v395
    %552 = vmatprep.subr.bf16.mxu0 %v400
    %553 = vmatpush1.bf16.msra.mxu0 %v399
    %554 = vmatprep.subr.bf16.mxu0 %v404
    %555 = vmatpush1.bf16.msra.mxu0 %v403
    %556 = vmatprep.subr.bf16.mxu0 %v408
    %557 = vmatpush1.bf16.msra.mxu0 %v407
    %558 = vmatprep.mubr.bf16.mxu0 %v146
    %559 = vmatmul.mubr.bf16.gmra.mrb[0].mxu0 %v145
    %v560 = vpop.f32.mrb[0].mxu0
    %v561 = vadd.f32 %v124, %v560
    %v562 = vpop.f32.mrb[0].mxu0
    %v563 = vadd.f32 %v128, %v562
    %v564 = vpop.f32.mrb[0].mxu0
    %v565 = vadd.f32 %v124, %v564
    %v566 = vpop.f32.mrb[0].mxu0
    %v567 = vadd.f32 %v128, %v566
    %568 = vmatprep.mubr.bf16.mxu0 %v148
    %569 = vmatmul.mubr.bf16.gmra.mrb[0].mxu0 %v147
    %v570 = vpop.f32.mrb[0].mxu0
    %v571 = vadd.f32 %v124, %v570
    %v572 = vpop.f32.mrb[0].mxu0
    %v573 = vadd.f32 %v128, %v572
    %v574 = vpop.f32.mrb[0].mxu0
    %v575 = vadd.f32 %v124, %v574
    %v576 = vpop.f32.mrb[0].mxu0
    %v577 = vadd.f32 %v128, %v576
    %578 = vdwg.mxu0
    %v579 = vmul.f32 %v508, 0.5
    %v580 = vmul.f32 %v510, 0.5
    %v581 = vmul.f32 %v561, 0.5
    %v582 = vmul.f32 %v563, 0.5
    %v583 = vmul.f32 %v512, 0.5
    %v584 = vmul.f32 %v514, 0.5
    %v585 = vmul.f32 %v565, 0.5
    %v586 = vmul.f32 %v567, 0.5
    %v587 = vmul.f32 %v518, 0.5
    %v588 = vmul.f32 %v520, 0.5
    %v589 = vmul.f32 %v571, 0.5
    %v590 = vmul.f32 %v573, 0.5
    %v591 = vmul.f32 %v522, 0.5
    %v592 = vmul.f32 %v524, 0.5
    %v593 = vmul.f32 %v575, 0.5
    %v594 = vmul.f32 %v577, 0.5
    %v595 = vmul.f32 %v508, 0.70710677
    %v596 = vmul.f32 %v510, 0.70710677
    %v597 = vmul.f32 %v561, 0.70710677
    %v598 = vmul.f32 %v563, 0.70710677
    %v599 = vmul.f32 %v512, 0.70710677
    %v600 = vmul.f32 %v514, 0.70710677
    %v601 = vmul.f32 %v565, 0.70710677
    %v602 = vmul.f32 %v567, 0.70710677
    %v603 = vmul.f32 %v518, 0.70710677
    %v604 = vmul.f32 %v520, 0.70710677
    %v605 = vmul.f32 %v571, 0.70710677
    %v606 = vmul.f32 %v573, 0.70710677
    %v607 = vmul.f32 %v522, 0.70710677
    %v608 = vmul.f32 %v524, 0.70710677
    %v609 = vmul.f32 %v575, 0.70710677
    %v610 = vmul.f32 %v577, 0.70710677
    %v611 = verf.f32.pop %v595
    %v612 = verf.f32.pop %v596
    %v613 = verf.f32.pop %v597
    %v614 = verf.f32.pop %v598
    %v615 = verf.f32.pop %v599
    %v616 = verf.f32.pop %v600
    %v617 = verf.f32.pop %v601
    %v618 = verf.f32.pop %v602
    %v619 = verf.f32.pop %v603
    %v620 = verf.f32.pop %v604
    %v621 = verf.f32.pop %v605
    %v622 = verf.f32.pop %v606
    %v623 = verf.f32.pop %v607
    %v624 = verf.f32.pop %v608
    %v625 = verf.f32.pop %v609
    %v626 = verf.f32.pop %v610
    %v627 = vadd.f32 %v611, 1.0
    %v628 = vadd.f32 %v612, 1.0
    %v629 = vadd.f32 %v613, 1.0
    %v630 = vadd.f32 %v614, 1.0
    %v631 = vadd.f32 %v615, 1.0
    %v632 = vadd.f32 %v616, 1.0
    %v633 = vadd.f32 %v617, 1.0
    %v634 = vadd.f32 %v618, 1.0
    %v635 = vadd.f32 %v619, 1.0
    %v636 = vadd.f32 %v620, 1.0
    %v637 = vadd.f32 %v621, 1.0
    %v638 = vadd.f32 %v622, 1.0
    %v639 = vadd.f32 %v623, 1.0
    %v640 = vadd.f32 %v624, 1.0
    %v641 = vadd.f32 %v625, 1.0
    %v642 = vadd.f32 %v626, 1.0
    %v643 = vmul.f32 %v579, %v627
    %v644 = vmul.f32 %v580, %v628
    %v645 = vmul.f32 %v581, %v629
    %v646 = vmul.f32 %v582, %v630
    %v647 = vmul.f32 %v583, %v631
    %v648 = vmul.f32 %v584, %v632
    %v649 = vmul.f32 %v585, %v633
    %v650 = vmul.f32 %v586, %v634
    %v651 = vmul.f32 %v587, %v635
    %v652 = vmul.f32 %v588, %v636
    %v653 = vmul.f32 %v589, %v637
    %v654 = vmul.f32 %v590, %v638
    %v655 = vmul.f32 %v591, %v639
    %v656 = vmul.f32 %v592, %v640
    %v657 = vmul.f32 %v593, %v641
    %v658 = vmul.f32 %v594, %v642
    %659 = vst [vmem:[#allocation7] sm:$0xff] %v643
    %660 = vst [vmem:[#allocation7 + $0x8] sm:$0xff] %v644
    %661 = vst [vmem:[#allocation7 + $0x10] sm:$0xff] %v645
    %662 = vst [vmem:[#allocation7 + $0x18] sm:$0xff] %v646
    %663 = vst [vmem:[#allocation7 + $0x20] sm:$0xff] %v647
    %664 = vst [vmem:[#allocation7 + $0x28] sm:$0xff] %v648
    %665 = vst [vmem:[#allocation7 + $0x30] sm:$0xff] %v649
    %666 = vst [vmem:[#allocation7 + $0x38] sm:$0xff] %v650
    %667 = vst [vmem:[#allocation7 + $0x40] sm:$0xff] %v651
    %668 = vst [vmem:[#allocation7 + $0x48] sm:$0xff] %v652
    %669 = vst [vmem:[#allocation7 + $0x50] sm:$0xff] %v653
    %670 = vst [vmem:[#allocation7 + $0x58] sm:$0xff] %v654
    %671 = vst [vmem:[#allocation7 + $0x60] sm:$0xff] %v655
    %672 = vst [vmem:[#allocation7 + $0x68] sm:$0xff] %v656
    %673 = vst [vmem:[#allocation7 + $0x70] sm:$0xff] %v657
    %674 = vst [vmem:[#allocation7 + $0x78] sm:$0xff] %v658
    // Predicated region
    $region22: #{tpu_custom_call.1} parent=1 // pred_check
      _
    $region23: #{tpu_custom_call.1} parent=1 // pred_check_branch
      %676 = sbr.rel (0) target = $region25
    $region24: #{tpu_custom_call.1} parent=1 // pred_region
      %s678 = ssub.s32 2048, 2048
      %679 = vsyncadd [#allocation4], %s678
      %s680 = sshll.u32 [#allocation7], 4
      %s681 = int_to_ptr.vmem [resolvable:$true] %s680
      %686 = dma.vmem_to_hbm [thread:$0]  %s681, 2048, %s3, [#allocation4], 512, 512, 32
    $region25: #{tpu_custom_call.1} parent=1 // pred_fallthru
      _
    // Predicated region
    $region26: #{tpu_custom_call.1} parent=1 // pred_check
      _
    $region27: #{tpu_custom_call.1} parent=1 // pred_check_branch
      %688 = sbr.rel (0) target = $region29
    $region28: #{tpu_custom_call.1} parent=1 // pred_region
      %689 = dma.done [#allocation4], 2048
    $region29: #{tpu_custom_call.1} parent=1 // pred_fallthru
      _
    %690 = vsyncpa [#allocation3], 1
    %691 = vsyncpa [#allocation6], 1
    %692 = vsyncpa [#allocation4], 1

</llo_original>
